<compile_context>
chip_gen: v7x
topology: tpu7x:2x2x1
jax: 0.10.0
libtpu: 0.0.40
codegen_flags: <defaults>
</compile_context>

<pallas_src>
import functools
import math

import jax
import jax.numpy as jnp
from jax.experimental import pallas as pl
from jax.experimental.pallas import tpu as pltpu

_LANE = 128


def _adapter_kernel(x_ref, w1_ref, b1_ref, w2_ref, b2_ref, o_ref):
    # x_ref: (tile, D) token tile in native dtype; params fully VMEM-resident.
    x = x_ref[...]

    # fc1: native-dtype MXU inputs, f32 accumulation.
    h = jnp.dot(x, w1_ref[...], preferred_element_type=jnp.float32)
    h = h + b1_ref[...].astype(jnp.float32)

    # Exact (erf-based) GELU -- matches torch.nn.GELU() default. f32 math.
    h = 0.5 * h * (1.0 + jax.lax.erf(h * (1.0 / math.sqrt(2.0))))

    # fc2: second matmul fed in the weight dtype (no-op for f32, native bf16
    # fast path otherwise), f32 accumulation.
    y = jnp.dot(h.astype(w2_ref.dtype), w2_ref[...],
                preferred_element_type=jnp.float32)
    y = y + b2_ref[...].astype(jnp.float32)

    # Skip connection.  f32 inputs: add in f32 (exact).  Low-precision inputs:
    # add in the input dtype (matches a bf16 torch module) to avoid a full
    # f32 copy of the tile.
    if x.dtype == jnp.float32:
        o_ref[...] = (x + y).astype(o_ref.dtype)
    else:
        o_ref[...] = x + y.astype(x.dtype)


def _round_up(n, m):
    return ((n + m - 1) // m) * m


@functools.partial(jax.jit, static_argnames=("tile_n",))
def adapter_forward(x, w1, b1, w2, b2, *, tile_n=8192):
    """x: (..., D).  w1: (D, H), b1: (H,), w2: (H, D), b2: (D,)."""
    orig_shape = x.shape
    D = orig_shape[-1]
    H = w1.shape[1]
    x2 = x.reshape(-1, D)
    N = x2.shape[0]

    x_bytes = x.dtype.itemsize
    w_bytes = w1.dtype.itemsize

    # Sublane granularity from dtype packing: f32 -> 8, bf16 -> 16, int8 -> 32.
    sublane = 8 * max(1, 4 // x_bytes)

    # Token tile: big to amortize per-grid-step overhead, but never more than
    # ceil(N/2) (so the "parallel" grid has >=2 steps for v7x's dual TCs).
    tile = min(_round_up(tile_n, sublane), _round_up(pl.cdiv(N, 2), sublane))
    tile = max(sublane, tile)

    # --- VMEM footprint with physical lane padding (minor dim pads to 128).
    D_p = _round_up(D, _LANE)
    H_p = _round_up(H, _LANE)
    param_live = 2 * (_round_up(D, 8) * H_p + 8 * H_p
                      + _round_up(H, 8) * D_p + 8 * D_p) * w_bytes

    def vmem_live(t):
        io = 2 * t * D_p * x_bytes * 2           # in + out tiles, double-buffered
        inter = t * (2 * H_p + D_p) * 4          # f32 temporaries (h, gelu, y)
        return io + inter + param_live

    # Generation-aware cap: physical VMEM minus headroom; conservative 48 MiB
    # fallback is safe on v5e/v6e/v7x alike.
    try:
        vmem_cap = int(pltpu.get_tpu_info().vmem_capacity_bytes) - (16 << 20)
    except Exception:
        vmem_cap = 48 << 20
    vmem_cap = max(vmem_cap, 32 << 20)

    # Shrink the tile if the lane-padded footprint would not fit under the cap.
    while tile > sublane and int(1.25 * vmem_live(tile)) + (4 << 20) > vmem_cap:
        tile = max(sublane, _round_up(tile // 2, sublane))

    vmem_limit = min(max(int(1.25 * vmem_live(tile)) + (4 << 20), 16 << 20),
                     vmem_cap)

    # Ragged N: no padding, no slicing -- Pallas clips the tail block (reads of
    # the partial block are allowed; out-of-range rows are never written back).
    grid = (pl.cdiv(N, tile),)

    b1_2 = b1.reshape(1, H)
    b2_2 = b2.reshape(1, D)

    param_bytes = (D * H + H + H * D + D) * w_bytes
    cost = pl.CostEstimate(
        flops=4 * N * D * H,
        transcendentals=N * H,
        bytes_accessed=2 * N * D * x_bytes + param_bytes,
    )

    out = pl.pallas_call(
        _adapter_kernel,
        out_shape=jax.ShapeDtypeStruct((N, D), x.dtype),
        grid_spec=pltpu.PrefetchScalarGridSpec(
            num_scalar_prefetch=0,
            grid=grid,
            in_specs=[
                pl.BlockSpec((tile, D), lambda i: (i, 0)),   # x tile
                pl.BlockSpec((D, H), lambda i: (0, 0)),      # w1 (resident)
                pl.BlockSpec((1, H), lambda i: (0, 0)),      # b1
                pl.BlockSpec((H, D), lambda i: (0, 0)),      # w2 (resident)
                pl.BlockSpec((1, D), lambda i: (0, 0)),      # b2
            ],
            out_specs=pl.BlockSpec((tile, D), lambda i: (i, 0)),
        ),
        compiler_params=pltpu.CompilerParams(
            dimension_semantics=("parallel",),
            vmem_limit_bytes=vmem_limit,
        ),
        cost_estimate=cost,
    )(x2, w1, b1_2, w2, b2_2)

    return out.reshape(orig_shape)


def _reference(x, w1, b1, w2, b2):
    h = jnp.dot(x, w1) + b1
    h = 0.5 * h * (1.0 + jax.lax.erf(h / jnp.sqrt(2.0)))
    y = jnp.dot(h, w2) + b2
    return x + y


if __name__ == "__main__":
    # Module config: D_features=64, mlp_ratio=0.25 -> hidden=16, skip_connect=True
    D_features = 64
    mlp_ratio = 0.25
    D_hidden = int(D_features * mlp_ratio)

    key = jax.random.PRNGKey(0)
    kx, kw1, kb1, kw2, kb2, kx2 = jax.random.split(key, 6)

    # Deterministic parameters (Linear weights stored transposed: (in, out)).
    w1 = jax.random.normal(kw1, (D_features, D_hidden), dtype=jnp.float32) * 0.05
    b1 = jax.random.normal(kb1, (D_hidden,), dtype=jnp.float32) * 0.05
    w2 = jax.random.normal(kw2, (D_hidden, D_features), dtype=jnp.float32) * 0.05
    b2 = jax.random.normal(kb2, (D_features,), dtype=jnp.float32) * 0.05

    # Case 1: tile-aligned token count (batch=2, seq=8 -> N=16).
    x = jax.random.normal(kx, (2, 8, D_features), dtype=jnp.float32)
    out = jax.block_until_ready(adapter_forward(x, w1, b1, w2, b2))
    ref = _reference(x, w1, b1, w2, b2)
    assert out.shape == x.shape
    assert jnp.allclose(out, ref, atol=1e-5, rtol=1e-5), "mismatch vs reference (aligned N)"

    # Case 2: ragged token count (batch=3, seq=7 -> N=21) exercising the
    # clipped (un-padded) tail block.
    xr = jax.random.normal(kx2, (3, 7, D_features), dtype=jnp.float32)
    outr = jax.block_until_ready(adapter_forward(xr, w1, b1, w2, b2))
    refr = _reference(xr, w1, b1, w2, b2)
    assert outr.shape == xr.shape
    assert jnp.allclose(outr, refr, atol=1e-5, rtol=1e-5), "mismatch vs reference (ragged N)"

    print("KERNEL_OK")
</pallas_src>

<mosaic_0001>
module attributes {stable_mosaic.version = 11 : i64} {
  func.func @_adapter_kernel(%arg0: i32, %arg1: memref<8x64xf32, #tpu.memory_space<vmem>>, %arg2: memref<64x16xf32, #tpu.memory_space<vmem>>, %arg3: memref<1x16xf32, #tpu.memory_space<vmem>>, %arg4: memref<16x64xf32, #tpu.memory_space<vmem>>, %arg5: memref<1x64xf32, #tpu.memory_space<vmem>>, %arg6: memref<8x64xf32, #tpu.memory_space<vmem>>) attributes {dimension_semantics = [#tpu.dimension_semantics<parallel>], iteration_bounds = array<i64: 2>, scalar_prefetch = 0 : i64, scratch_operands = 0 : i64, tpu.core_type = #tpu.core_type<tc>, window_params = [{transform_indices = @transform_0, window_bounds = array<i64: 8, 64>}, {pipeline_mode = #tpu.pipeline_mode<synchronous>, transform_indices = @transform_1, window_bounds = array<i64: 64, 16>}, {pipeline_mode = #tpu.pipeline_mode<synchronous>, transform_indices = @transform_2, window_bounds = array<i64: 1, 16>}, {pipeline_mode = #tpu.pipeline_mode<synchronous>, transform_indices = @transform_3, window_bounds = array<i64: 16, 64>}, {pipeline_mode = #tpu.pipeline_mode<synchronous>, transform_indices = @transform_4, window_bounds = array<i64: 1, 64>}, {transform_indices = @transform_5, window_bounds = array<i64: 8, 64>}]} {
    %c0 = arith.constant 0 : index
    %c0_0 = arith.constant 0 : index
    %0 = vector.load %arg1[%c0, %c0_0] : memref<8x64xf32, #tpu.memory_space<vmem>>, vector<8x64xf32>
    %c0_1 = arith.constant 0 : index
    %c0_2 = arith.constant 0 : index
    %1 = vector.load %arg2[%c0_1, %c0_2] : memref<64x16xf32, #tpu.memory_space<vmem>>, vector<64x16xf32>
    %cst = arith.constant dense<0.000000e+00> : vector<8x16xf32>
    %2 = tpu.matmul %0, %1, %cst {dimension_numbers = #tpu.dot_dimension_numbers<[1], [0], [0], [1], [0, 0, 1, 1], [], []>} : vector<8x64xf32>, vector<64x16xf32>, vector<8x16xf32> -> vector<8x16xf32>
    %c0_3 = arith.constant 0 : index
    %c0_4 = arith.constant 0 : index
    %3 = vector.load %arg3[%c0_3, %c0_4] : memref<1x16xf32, #tpu.memory_space<vmem>>, vector<1x16xf32>
    %4 = vector.broadcast %3 : vector<1x16xf32> to vector<8x16xf32>
    %5 = arith.addf %2, %4 : vector<8x16xf32>
    %cst_5 = arith.constant 5.000000e-01 : f32
    %6 = vector.broadcast %cst_5 : f32 to vector<8x16xf32>
    %7 = arith.mulf %6, %5 : vector<8x16xf32>
    %cst_6 = arith.constant 0.707106769 : f32
    %8 = vector.broadcast %cst_6 : f32 to vector<8x16xf32>
    %9 = arith.mulf %5, %8 : vector<8x16xf32>
    %10 = math.erf %9 : vector<8x16xf32>
    %cst_7 = arith.constant 1.000000e+00 : f32
    %11 = vector.broadcast %cst_7 : f32 to vector<8x16xf32>
    %12 = arith.addf %11, %10 : vector<8x16xf32>
    %13 = arith.mulf %7, %12 : vector<8x16xf32>
    %c0_8 = arith.constant 0 : index
    %c0_9 = arith.constant 0 : index
    %14 = vector.load %arg4[%c0_8, %c0_9] : memref<16x64xf32, #tpu.memory_space<vmem>>, vector<16x64xf32>
    %cst_10 = arith.constant dense<0.000000e+00> : vector<8x64xf32>
    %15 = tpu.matmul %13, %14, %cst_10 {dimension_numbers = #tpu.dot_dimension_numbers<[1], [0], [0], [1], [0, 0, 1, 1], [], []>} : vector<8x16xf32>, vector<16x64xf32>, vector<8x64xf32> -> vector<8x64xf32>
    %c0_11 = arith.constant 0 : index
    %c0_12 = arith.constant 0 : index
    %16 = vector.load %arg5[%c0_11, %c0_12] : memref<1x64xf32, #tpu.memory_space<vmem>>, vector<1x64xf32>
    %17 = vector.broadcast %16 : vector<1x64xf32> to vector<8x64xf32>
    %18 = arith.addf %15, %17 : vector<8x64xf32>
    %19 = arith.addf %0, %18 : vector<8x64xf32>
    %c0_13 = arith.constant 0 : index
    %c0_14 = arith.constant 0 : index
    %20 = vector.load %arg6[%c0_13, %c0_14] : memref<8x64xf32, #tpu.memory_space<vmem>>, vector<8x64xf32>
    tpu.vector_store %arg6[%c0_13, %c0_14], %19 {strides = array<i32>} : memref<8x64xf32, #tpu.memory_space<vmem>>, vector<8x64xf32>,
    return
  }
  func.func @transform_0(%arg0: i32) -> (i32, i32) {
    %c0_i32 = arith.constant 0 : i32
    %c0_i32_0 = arith.constant 0 : i32
    return %arg0, %c0_i32 : i32, i32
  }
  func.func @transform_1(%arg0: i32) -> (i32, i32) {
    %c0_i32 = arith.constant 0 : i32
    %c0_i32_0 = arith.constant 0 : i32
    %c0_i32_1 = arith.constant 0 : i32
    return %c0_i32, %c0_i32_0 : i32, i32
  }
  func.func @transform_2(%arg0: i32) -> (i32, i32) {
    %c0_i32 = arith.constant 0 : i32
    %c0_i32_0 = arith.constant 0 : i32
    %c0_i32_1 = arith.constant 0 : i32
    return %c0_i32, %c0_i32_0 : i32, i32
  }
  func.func @transform_3(%arg0: i32) -> (i32, i32) {
    %c0_i32 = arith.constant 0 : i32
    %c0_i32_0 = arith.constant 0 : i32
    %c0_i32_1 = arith.constant 0 : i32
    return %c0_i32, %c0_i32_0 : i32, i32
  }
  func.func @transform_4(%arg0: i32) -> (i32, i32) {
    %c0_i32 = arith.constant 0 : i32
    %c0_i32_0 = arith.constant 0 : i32
    %c0_i32_1 = arith.constant 0 : i32
    return %c0_i32, %c0_i32_0 : i32, i32
  }
  func.func @transform_5(%arg0: i32) -> (i32, i32) {
    %c0_i32 = arith.constant 0 : i32
    %c0_i32_0 = arith.constant 0 : i32
    return %arg0, %c0_i32 : i32, i32
  }
}

</mosaic_0001>

<llo_original>
// kernel: adapter_forward.1
$region0: #{adapter_forward.1}
  #allocation0 [shape = 'u32[]', space=smem, size = 0x4, offset = 0x4, fixed_abs, tag = 'smem constant byte address 0x4 - core index']
  #allocation1 [shape = 'u32[144,128]{1,0:T(1,128)}', space=vmem, size = 0x12000, scoped, tag = 'internal scratch']
  %s0 = inlined_call_operand.vmem [shape: f32[16,64], index: 0, kind: input, shape index: {}]
  %s1 = inlined_call_operand.vmem [shape: f32[64,16], index: 1, kind: input, shape index: {}]
  %s2 = inlined_call_operand.vmem [shape: f32[1,16], index: 2, kind: input, shape index: {}]
  %s3 = inlined_call_operand.vmem [shape: f32[16,64], index: 3, kind: input, shape index: {}]
  %s4 = inlined_call_operand.vmem [shape: f32[1,64], index: 4, kind: input, shape index: {}]
  %s5 = inlined_call_operand.hbm [shape: f32[16,64], index: 5, kind: output, shape index: {}]
  %s6 = sld [smem:[#allocation0]]
  $region53: #{adapter_forward.1} parent=0
    _
  %s8 = ssub.s32 1, %s6
  %s9 = scalar_select 0, %s8, %s6
  $region1: #{adapter_forward.1} parent=0
    #allocation2 [shape = 'u8[8192]{0}', space=vmem, size = 0x2000, scoped, tag = 'output window, operand 0']
    #allocation3 [shape = 's32[2]{0}', space=sflag, size = 0x8, scoped, tag = 'scoped memory for adapter_forward.1']
    %10 = vsyncpa [#allocation3], 0
    %s11 = scalar_lea.sflag [#allocation3], 1
    %12 = vsyncpa %s11, 0
    loop: start=0, step=1, limit=4
    $region2: #{adapter_forward.1} parent=1 // loop_pre_header
      _
    $region3: #{adapter_forward.1} parent=1 // loop_header
      %s14 = sphi 0, %s18
      %p15 = scmp.ge.s32.totalorder %s14, 4
      %s24 = sphi 0, %s26
      %s27 = sphi 0, %s24
      %s28 = sphi 0, %s27
      %s44 = sphi 0, %s28
      %s48 = sphi 0, %s48
      %s50 = sphi 0, %s48
      %s51 = sphi 0, %s50
      %s65 = sphi 0, %s51
      %s69 = sphi 0, %s69
      %s71 = sphi 0, %s69
      %s72 = sphi 0, %s71
      %s86 = sphi 0, %s72
      %s90 = sphi 0, %s90
      %s92 = sphi 0, %s90
      %s93 = sphi 0, %s92
      %s107 = sphi 0, %s93
      %s111 = sphi 0, %s111
      %s113 = sphi 0, %s111
      %s114 = sphi 0, %s113
      %s128 = sphi 0, %s114
      %s134 = sphi 0, %s136
      %s137 = sphi 0, %s134
      %s138 = sphi 0, %s137
      %s154 = sphi 0, %s138
    $region4: #{adapter_forward.1} parent=1 // loop_header_branch
      %17 = sbr.rel (%p15) target = $region8
    $region5: #{adapter_forward.1} parent=1 // loop_body
      %s19 = ssub.s32 %s14, 1
      %s20 = ssub.s32 %s14, 2
      %s21 = sadd.s32 %s14, 1
      %s22 = ssub.s32 %s14, %s21
      %p23 = scmp.eq.s32.totalorder %s22, 0
      %s25 = sadd.s32 %s24, 1
      %s26 = scalar_select %p23, %s24, %s25
      %p29 = pneg %p23
      %p30 = scmp.eq.s32.totalorder %s14, 1
      %p31 = por %p29, %p30
      %p32 = scmp.ne.s32.totalorder %s24, %s27
      %p33 = scmp.eq.s32.totalorder %s14, 0
      %p34 = por %p32, %p33
      %p35 = scmp.ne.s32.totalorder %s24, %s27
      %p36 = scmp.eq.s32.totalorder %s19, 1
      %p37 = por %p35, %p36
      %p38 = scmp.ne.s32.totalorder %s27, %s28
      %p39 = scmp.eq.s32.totalorder %s19, 0
      %p40 = por %p38, %p39
      %p41 = scmp.ne.s32.totalorder %s27, %s28
      %p42 = scmp.eq.s32.totalorder %s20, 1
      %p43 = por %p41, %p42
      %p45 = scmp.ne.s32.totalorder %s28, %s44
      %p46 = scmp.eq.s32.totalorder %s20, 0
      %p47 = por %p45, %p46
      %s49 = sadd.s32 %s48, 1
      %p52 = scmp.eq.s32.totalorder %s14, 1
      %p53 = scmp.ne.s32.totalorder %s48, %s50
      %p54 = scmp.eq.s32.totalorder %s14, 0
      %p55 = por %p53, %p54
      %p56 = scmp.ne.s32.totalorder %s48, %s50
      %p57 = scmp.eq.s32.totalorder %s19, 1
      %p58 = por %p56, %p57
      %p59 = scmp.ne.s32.totalorder %s50, %s51
      %p60 = scmp.eq.s32.totalorder %s19, 0
      %p61 = por %p59, %p60
      %p62 = scmp.ne.s32.totalorder %s50, %s51
      %p63 = scmp.eq.s32.totalorder %s20, 1
      %p64 = por %p62, %p63
      %p66 = scmp.ne.s32.totalorder %s51, %s65
      %p67 = scmp.eq.s32.totalorder %s20, 0
      %p68 = por %p66, %p67
      %s70 = sadd.s32 %s69, 1
      %p73 = scmp.eq.s32.totalorder %s14, 1
      %p74 = scmp.ne.s32.totalorder %s69, %s71
      %p75 = scmp.eq.s32.totalorder %s14, 0
      %p76 = por %p74, %p75
      %p77 = scmp.ne.s32.totalorder %s69, %s71
      %p78 = scmp.eq.s32.totalorder %s19, 1
      %p79 = por %p77, %p78
      %p80 = scmp.ne.s32.totalorder %s71, %s72
      %p81 = scmp.eq.s32.totalorder %s19, 0
      %p82 = por %p80, %p81
      %p83 = scmp.ne.s32.totalorder %s71, %s72
      %p84 = scmp.eq.s32.totalorder %s20, 1
      %p85 = por %p83, %p84
      %p87 = scmp.ne.s32.totalorder %s72, %s86
      %p88 = scmp.eq.s32.totalorder %s20, 0
      %p89 = por %p87, %p88
      %s91 = sadd.s32 %s90, 1
      %p94 = scmp.eq.s32.totalorder %s14, 1
      %p95 = scmp.ne.s32.totalorder %s90, %s92
      %p96 = scmp.eq.s32.totalorder %s14, 0
      %p97 = por %p95, %p96
      %p98 = scmp.ne.s32.totalorder %s90, %s92
      %p99 = scmp.eq.s32.totalorder %s19, 1
      %p100 = por %p98, %p99
      %p101 = scmp.ne.s32.totalorder %s92, %s93
      %p102 = scmp.eq.s32.totalorder %s19, 0
      %p103 = por %p101, %p102
      %p104 = scmp.ne.s32.totalorder %s92, %s93
      %p105 = scmp.eq.s32.totalorder %s20, 1
      %p106 = por %p104, %p105
      %p108 = scmp.ne.s32.totalorder %s93, %s107
      %p109 = scmp.eq.s32.totalorder %s20, 0
      %p110 = por %p108, %p109
      %s112 = sadd.s32 %s111, 1
      %p115 = scmp.eq.s32.totalorder %s14, 1
      %p116 = scmp.ne.s32.totalorder %s111, %s113
      %p117 = scmp.eq.s32.totalorder %s14, 0
      %p118 = por %p116, %p117
      %p119 = scmp.ne.s32.totalorder %s111, %s113
      %p120 = scmp.eq.s32.totalorder %s19, 1
      %p121 = por %p119, %p120
      %p122 = scmp.ne.s32.totalorder %s113, %s114
      %p123 = scmp.eq.s32.totalorder %s19, 0
      %p124 = por %p122, %p123
      %p125 = scmp.ne.s32.totalorder %s113, %s114
      %p126 = scmp.eq.s32.totalorder %s20, 1
      %p127 = por %p125, %p126
      %p129 = scmp.ne.s32.totalorder %s114, %s128
      %p130 = scmp.eq.s32.totalorder %s20, 0
      %p131 = por %p129, %p130
      %s132 = ssub.s32 %s14, %s21
      %p133 = scmp.eq.s32.totalorder %s132, 0
      %s135 = sadd.s32 %s134, 1
      %s136 = scalar_select %p133, %s134, %s135
      %p139 = pneg %p133
      %p140 = scmp.eq.s32.totalorder %s14, 1
      %p141 = por %p139, %p140
      %p142 = scmp.ne.s32.totalorder %s134, %s137
      %p143 = scmp.eq.s32.totalorder %s14, 0
      %p144 = por %p142, %p143
      %p145 = scmp.ne.s32.totalorder %s134, %s137
      %p146 = scmp.eq.s32.totalorder %s19, 1
      %p147 = por %p145, %p146
      %p148 = scmp.ne.s32.totalorder %s137, %s138
      %p149 = scmp.eq.s32.totalorder %s19, 0
      %p150 = por %p148, %p149
      %p151 = scmp.ne.s32.totalorder %s137, %s138
      %p152 = scmp.eq.s32.totalorder %s20, 1
      %p153 = por %p151, %p152
      %p155 = scmp.ne.s32.totalorder %s138, %s154
      %p156 = scmp.eq.s32.totalorder %s20, 0
      %p157 = por %p155, %p156
      %p158 = scmp.le.s32.totalorder 1, %s14
      %p159 = scmp.lt.s32.totalorder %s14, 3
      %p160 = pnand %p158, %p159
      %p161 = pneg %p160
      // Predicated region
      $region9: #{adapter_forward.1} parent=5 // pred_check
        _
      $region10: #{adapter_forward.1} parent=5 // pred_check_branch
        %163 = sbr.rel (%p160) target = $region12
      $region11: #{adapter_forward.1} parent=5 // pred_region
        %s164 = ssub.s32 %s14, 1
        // Predicated region
        $region13: #{adapter_forward.1} parent=11 // pred_check
          %p165 = pneg %p61
        $region14: #{adapter_forward.1} parent=11 // pred_check_branch
          %167 = sbr.rel (%p165) target = $region16
        $region15: #{adapter_forward.1} parent=11 // pred_region
          _
        $region16: #{adapter_forward.1} parent=11 // pred_fallthru
          _
        // Predicated region
        $region17: #{adapter_forward.1} parent=11 // pred_check
          %p168 = pneg %p82
        $region18: #{adapter_forward.1} parent=11 // pred_check_branch
          %170 = sbr.rel (%p168) target = $region20
        $region19: #{adapter_forward.1} parent=11 // pred_region
          _
        $region20: #{adapter_forward.1} parent=11 // pred_fallthru
          _
        // Predicated region
        $region21: #{adapter_forward.1} parent=11 // pred_check
          %p171 = pneg %p103
        $region22: #{adapter_forward.1} parent=11 // pred_check_branch
          %173 = sbr.rel (%p171) target = $region24
        $region23: #{adapter_forward.1} parent=11 // pred_region
          _
        $region24: #{adapter_forward.1} parent=11 // pred_fallthru
          _
        // Predicated region
        $region25: #{adapter_forward.1} parent=11 // pred_check
          %p174 = pneg %p124
        $region26: #{adapter_forward.1} parent=11 // pred_check_branch
          %176 = sbr.rel (%p174) target = $region28
        $region27: #{adapter_forward.1} parent=11 // pred_region
          _
        $region28: #{adapter_forward.1} parent=11 // pred_fallthru
          _
      $region12: #{adapter_forward.1} parent=5 // pred_fallthru
        _
      %p177 = scmp.lt.s32.totalorder %s14, 2
      // Predicated region
      $region29: #{adapter_forward.1} parent=5 // pred_check
        %p178 = pneg %p177
      $region30: #{adapter_forward.1} parent=5 // pred_check_branch
        %180 = sbr.rel (%p178) target = $region32
      $region31: #{adapter_forward.1} parent=5 // pred_region
        // Predicated region
        $region33: #{adapter_forward.1} parent=31 // pred_check
          %p181 = pneg %p34
        $region34: #{adapter_forward.1} parent=31 // pred_check_branch
          %183 = sbr.rel (%p181) target = $region36
        $region35: #{adapter_forward.1} parent=31 // pred_region
          %p184 = scmp.lt.s32.totalorder %s14, 1
          %s185 = scalar_select %p184, %s14, 1
          %s186 = smul.addr %s185, 8
          %s187 = scalar_lea.vmem %s0, %s186
        $region36: #{adapter_forward.1} parent=31 // pred_fallthru
          _
      $region32: #{adapter_forward.1} parent=5 // pred_fallthru
        _
      %p188 = scmp.le.s32.totalorder 1, %s14
      %p189 = scmp.lt.s32.totalorder %s14, 3
      %p190 = pnand %p188, %p189
      %p191 = pneg %p190
      // Predicated region
      $region37: #{adapter_forward.1} parent=5 // pred_check
        _
      $region38: #{adapter_forward.1} parent=5 // pred_check_branch
        %193 = sbr.rel (%p190) target = $region40
      $region39: #{adapter_forward.1} parent=5 // pred_region
        %s194 = ssub.s32 %s14, 1
        %p195 = scmp.lt.s32.totalorder %s19, 1
        %s196 = scalar_select %p195, %s19, 1
        %s197 = smul.addr %s196, 8
        %s198 = scalar_lea.vmem %s0, %s197
        %p199 = pneg %p40
        %p200 = pneg %p37
        %p201 = pneg %p61
        %p202 = pneg %p58
        %p203 = pneg %p82
        %p204 = pneg %p79
        %p205 = pneg %p103
        %p206 = pneg %p100
        %p207 = pneg %p124
        %p208 = pneg %p121
        %p209 = pneg %p150
        %p210 = pneg %p147
        %s211 = sand.u32 %s137, 1
        %s212 = scalar_lea.sflag [#allocation3], %s211
        %s213 = sand.u32 %s137, 1
        %s214 = smul.addr %s213, 8
        %s215 = scalar_lea.vmem [#allocation2], %s214
        %p216 = scmp.lt.s32.totalorder %s19, 1
        %s217 = scalar_select %p216, %s19, 1
        %s218 = smul.addr %s217, 8
        %s219 = scalar_lea.vmem %s0, %s218
        %v220 = vld [vmem:[%s219] sm:$0xff]
        %v221 = vld [vmem:[%s1] sm:$0xff]
        %v222 = vld [vmem:[%s1 + $0x8] sm:$0xff]
        %v223 = vld [vmem:[%s1 + $0x10] sm:$0xff]
        %v224 = vld [vmem:[%s1 + $0x18] sm:$0xff]
        %v225 = vld [vmem:[%s1 + $0x20] sm:$0xff]
        %v226 = vld [vmem:[%s1 + $0x28] sm:$0xff]
        %v227 = vld [vmem:[%s1 + $0x30] sm:$0xff]
        %v228 = vld [vmem:[%s1 + $0x38] sm:$0xff]
        %v229 = vld [vmem:[%s2] sm:$0x1]
        %v231 = vlaneseq
        %v232 = vshrl.u32 %v231, 7
        %v233 = vsub.s32 0, %v232
        %v234 = vrot.slane %v229, %v233
        %vm236 = vcmask 523264
        %v238 = vsel %vm236, %v220, 0
        %240 = vmatprep.subr.mxu0 0.0
        %241 = vmatpush1.msra.mxu0 %v221
        %242 = vmatprep.subr.mxu0 0.0
        %243 = vmatpush1.msra.mxu0 %v222
        %244 = vmatprep.subr.mxu0 0.0
        %245 = vmatpush1.msra.mxu0 %v223
        %246 = vmatprep.subr.mxu0 0.0
        %247 = vmatpush1.msra.mxu0 %v224
        %248 = vmatprep.subr.mxu0 0.0
        %249 = vmatpush1.msra.mxu0 %v225
        %250 = vmatprep.subr.mxu0 0.0
        %251 = vmatpush1.msra.mxu0 %v226
        %252 = vmatprep.subr.mxu0 0.0
        %253 = vmatpush1.msra.mxu0 %v227
        %254 = vmatprep.subr.mxu0 0.0
        %255 = vmatpush1.msra.mxu0 %v228
        %256 = vmatprep.subr.mxu0 0.0
        %257 = vmatpush1.msra.mxu0 0.0
        %258 = vmatprep.subr.mxu0 0.0
        %259 = vmatpush1.msra.mxu0 0.0
        %260 = vmatprep.subr.mxu0 0.0
        %261 = vmatpush1.msra.mxu0 0.0
        %262 = vmatprep.subr.mxu0 0.0
        %263 = vmatpush1.msra.mxu0 0.0
        %264 = vmatprep.subr.mxu0 0.0
        %265 = vmatpush1.msra.mxu0 0.0
        %266 = vmatprep.subr.mxu0 0.0
        %267 = vmatpush1.msra.mxu0 0.0
        %268 = vmatprep.subr.mxu0 0.0
        %269 = vmatpush1.msra.mxu0 0.0
        %270 = vmatprep.subr.mxu0 0.0
        %271 = vmatpush1.msra.mxu0 0.0
        %272 = vmatprep.subr.mxu0 0.0
        %273 = vmatpush1.msra.mxu0 0.0
        %274 = vmatprep.subr.mxu0 0.0
        %275 = vmatpush1.msra.mxu0 0.0
        %276 = vmatprep.subr.mxu0 0.0
        %277 = vmatpush1.msra.mxu0 0.0
        %278 = vmatprep.subr.mxu0 0.0
        %279 = vmatpush1.msra.mxu0 0.0
        %280 = vmatprep.subr.mxu0 0.0
        %281 = vmatpush1.msra.mxu0 0.0
        %282 = vmatprep.subr.mxu0 0.0
        %283 = vmatpush1.msra.mxu0 0.0
        %284 = vmatprep.subr.mxu0 0.0
        %285 = vmatpush1.msra.mxu0 0.0
        %286 = vmatprep.subr.mxu0 0.0
        %287 = vmatpush1.msra.mxu0 0.0
        %288 = vmatprep.subr.mxu0 0.0
        %289 = vmatpush1.msra.mxu0 0.0
        %290 = vmatprep.subr.mxu0 0.0
        %291 = vmatpush1.msra.mxu0 0.0
        %292 = vmatprep.subr.mxu0 0.0
        %293 = vmatpush1.msra.mxu0 0.0
        %294 = vmatprep.subr.mxu0 0.0
        %295 = vmatpush1.msra.mxu0 0.0
        %296 = vmatprep.subr.mxu0 0.0
        %297 = vmatpush1.msra.mxu0 0.0
        %298 = vmatprep.subr.mxu0 0.0
        %299 = vmatpush1.msra.mxu0 0.0
        %300 = vmatprep.subr.mxu0 0.0
        %301 = vmatpush1.msra.mxu0 0.0
        %302 = vmatprep.subr.mxu0 0.0
        %303 = vmatpush1.msra.mxu0 0.0
        %304 = vmatprep.mubr.f32.mxu0 0.0
        %305 = vmatmul.mubr.f32.gmra.mrb[0].mxu0 %v238
        %v306 = vpop.f32.mrb[0].mxu0
        %v307 = vadd.f32 %v234, %v306
        %v308 = vpop.f32.mrb[0].mxu0
        %309 = vdwg.mxu0
        %v310 = vmul.f32 %v307, 0.5
        %v311 = vmul.f32 %v307, 0.70710677
        %v312 = verf.f32.pop %v311
        %v313 = vadd.f32 %v312, 1.0
        %v314 = vmul.f32 %v310, %v313
        %v315 = vld [vmem:[%s3] sm:$0xff]
        %v316 = vld [vmem:[%s3 + $0x8] sm:$0xff]
        %v317 = vld [vmem:[%s4] sm:$0x1]
        %v319 = vlaneseq
        %v320 = vshrl.u32 %v319, 7
        %v321 = vsub.s32 0, %v320
        %v322 = vrot.slane %v317, %v321
        %vm324 = vcmask 130048
        %v326 = vsel %vm324, %v314, 0
        %328 = vmatprep.subr.mxu0 0.0
        %329 = vmatpush1.msra.mxu0 %v315
        %330 = vmatprep.subr.mxu0 0.0
        %331 = vmatpush1.msra.mxu0 %v316
        %332 = vmatprep.subr.mxu0 0.0
        %333 = vmatpush1.msra.mxu0 0.0
        %334 = vmatprep.subr.mxu0 0.0
        %335 = vmatpush1.msra.mxu0 0.0
        %336 = vmatprep.subr.mxu0 0.0
        %337 = vmatpush1.msra.mxu0 0.0
        %338 = vmatprep.subr.mxu0 0.0
        %339 = vmatpush1.msra.mxu0 0.0
        %340 = vmatprep.subr.mxu0 0.0
        %341 = vmatpush1.msra.mxu0 0.0
        %342 = vmatprep.subr.mxu0 0.0
        %343 = vmatpush1.msra.mxu0 0.0
        %344 = vmatprep.subr.mxu0 0.0
        %345 = vmatpush1.msra.mxu0 0.0
        %346 = vmatprep.subr.mxu0 0.0
        %347 = vmatpush1.msra.mxu0 0.0
        %348 = vmatprep.subr.mxu0 0.0
        %349 = vmatpush1.msra.mxu0 0.0
        %350 = vmatprep.subr.mxu0 0.0
        %351 = vmatpush1.msra.mxu0 0.0
        %352 = vmatprep.subr.mxu0 0.0
        %353 = vmatpush1.msra.mxu0 0.0
        %354 = vmatprep.subr.mxu0 0.0
        %355 = vmatpush1.msra.mxu0 0.0
        %356 = vmatprep.subr.mxu0 0.0
        %357 = vmatpush1.msra.mxu0 0.0
        %358 = vmatprep.subr.mxu0 0.0
        %359 = vmatpush1.msra.mxu0 0.0
        %360 = vmatprep.subr.mxu0 0.0
        %361 = vmatpush1.msra.mxu0 0.0
        %362 = vmatprep.subr.mxu0 0.0
        %363 = vmatpush1.msra.mxu0 0.0
        %364 = vmatprep.subr.mxu0 0.0
        %365 = vmatpush1.msra.mxu0 0.0
        %366 = vmatprep.subr.mxu0 0.0
        %367 = vmatpush1.msra.mxu0 0.0
        %368 = vmatprep.subr.mxu0 0.0
        %369 = vmatpush1.msra.mxu0 0.0
        %370 = vmatprep.subr.mxu0 0.0
        %371 = vmatpush1.msra.mxu0 0.0
        %372 = vmatprep.subr.mxu0 0.0
        %373 = vmatpush1.msra.mxu0 0.0
        %374 = vmatprep.subr.mxu0 0.0
        %375 = vmatpush1.msra.mxu0 0.0
        %376 = vmatprep.subr.mxu0 0.0
        %377 = vmatpush1.msra.mxu0 0.0
        %378 = vmatprep.subr.mxu0 0.0
        %379 = vmatpush1.msra.mxu0 0.0
        %380 = vmatprep.subr.mxu0 0.0
        %381 = vmatpush1.msra.mxu0 0.0
        %382 = vmatprep.subr.mxu0 0.0
        %383 = vmatpush1.msra.mxu0 0.0
        %384 = vmatprep.subr.mxu0 0.0
        %385 = vmatpush1.msra.mxu0 0.0
        %386 = vmatprep.subr.mxu0 0.0
        %387 = vmatpush1.msra.mxu0 0.0
        %388 = vmatprep.subr.mxu0 0.0
        %389 = vmatpush1.msra.mxu0 0.0
        %390 = vmatprep.subr.mxu0 0.0
        %391 = vmatpush1.msra.mxu0 0.0
        %392 = vmatprep.mubr.f32.mxu0 0.0
        %393 = vmatmul.mubr.f32.gmra.mrb[0].mxu0 %v326
        %v394 = vpop.f32.mrb[0].mxu0
        %v395 = vadd.f32 %v322, %v394
        %v396 = vpop.f32.mrb[0].mxu0
        %397 = vdwg.mxu0
        %v398 = vadd.f32 %v220, %v395
        %399 = vst.msk [vmem:[%s215] sm:$0xff] %vm236, %v398
        %s400 = sand.u32 %s137, 1
        %s401 = scalar_lea.sflag [#allocation3], %s400
        %s402 = sand.u32 %s137, 1
        %s403 = smul.addr %s402, 8
        %s404 = scalar_lea.vmem [#allocation2], %s403
        // Predicated region
        $region41: #{adapter_forward.1} parent=39 // pred_check
          %p405 = pneg %p147
        $region42: #{adapter_forward.1} parent=39 // pred_check_branch
          %407 = sbr.rel (%p405) target = $region44
        $region43: #{adapter_forward.1} parent=39 // pred_region
          %s409 = ssub.s32 128, 128
          %410 = vsyncadd %s401, %s409
          %s411 = smul.addr %s19, 128
          %s412 = scalar_lea.hbm %s5, %s411
          %s414 = sshll.u32 %s404, 4
          %s415 = int_to_ptr.vmem [resolvable:$true] %s414
          %417 = dma.vmem_to_hbm [thread:$0]  %s415, 128, %s412, %s401
        $region44: #{adapter_forward.1} parent=39 // pred_fallthru
          _
      $region40: #{adapter_forward.1} parent=5 // pred_fallthru
        _
      %p418 = scmp.le.s32.totalorder 2, %s14
      // Predicated region
      $region45: #{adapter_forward.1} parent=5 // pred_check
        %p419 = pneg %p418
      $region46: #{adapter_forward.1} parent=5 // pred_check_branch
        %421 = sbr.rel (%p419) target = $region48
      $region47: #{adapter_forward.1} parent=5 // pred_region
        %s422 = ssub.s32 %s14, 2
        // Predicated region
        $region49: #{adapter_forward.1} parent=47 // pred_check
          %p423 = pneg %p153
        $region50: #{adapter_forward.1} parent=47 // pred_check_branch
          %425 = sbr.rel (%p423) target = $region52
        $region51: #{adapter_forward.1} parent=47 // pred_region
          %s426 = sand.u32 %s138, 1
          %s427 = scalar_lea.sflag [#allocation3], %s426
          %s428 = sand.u32 %s138, 1
          %s429 = smul.addr %s428, 8
          %s430 = scalar_lea.vmem [#allocation2], %s429
          %431 = dma.done %s427, 128
        $region52: #{adapter_forward.1} parent=47 // pred_fallthru
          _
      $region48: #{adapter_forward.1} parent=5 // pred_fallthru
        _
    $region6: #{adapter_forward.1} parent=1 // loop_footer
      %s18 = sadd.s32 1, %s14
    $region7: #{adapter_forward.1} parent=1 // loop_footer_branch
      %13 = sbr.rel target = $region3
    $region8: #{adapter_forward.1} parent=1 // loop_exit
      _
    %432 = vsyncpa [#allocation3], 1
    %s433 = scalar_lea.sflag [#allocation3], 1
    %434 = vsyncpa %s433, 1

</llo_original>
